<compile_context>
chip_gen: v7x
topology: tpu7x:2x2x1
jax: 0.10.0
libtpu: 0.0.40
codegen_flags: <defaults>
</compile_context>

<pallas_src>
import functools

import jax
import jax.numpy as jnp
from jax.experimental import pallas as pl
from jax.experimental.pallas import tpu as pltpu


# ----------------------------------------------------------------------------
# Kernel: per-channel weighted Dice reduction sums.
#   inputs  : pred logits (C*F, tile), target (C*F, tile), voxel weights (F, tile)
#   outputs : per-(batch, split) intersection / weighted-pred-sum /
#             weighted-target-sum, each (C*F, 1), resident accumulators across
#             the lane-tile grid axis.
# Grid = (B, S, n_per_split): batch & core-split axes "parallel" (megacore /
# v7x 2-TC), lane-tile axis "arbitrary" (reduction).
# ----------------------------------------------------------------------------
def _dice_sums_kernel(p_ref, t_ref, w_ref, inter_ref, psum_ref, tsum_ref,
                      *, C, F, tile_n, n_valid, n_per_split, needs_mask):
    s = pl.program_id(1)
    i = pl.program_id(2)

    @pl.when(i == 0)
    def _init():
        inter_ref[...] = jnp.zeros_like(inter_ref)
        psum_ref[...] = jnp.zeros_like(psum_ref)
        tsum_ref[...] = jnp.zeros_like(tsum_ref)

    def body(valid):
        w = w_ref[...].astype(jnp.float32)                    # (F, tile)
        if valid is not None:
            w = jnp.where(valid, w, 0.0)
        # Static unroll over channels: each (F, tile) slice is a whole aligned
        # f32 sublane tile, and the same w block is reused for every channel.
        for c in range(C):
            sl = pl.ds(c * F, F)
            p = jax.nn.sigmoid(p_ref[sl, :].astype(jnp.float32))  # EUP, f32 math
            t = t_ref[sl, :].astype(jnp.float32)
            if valid is not None:
                # Keep ALL operands masked: OOB garbage may be NaN/Inf.
                p = jnp.where(valid, p, 0.0)
                t = jnp.where(valid, t, 0.0)
            wp = w * p
            wt = w * t
            inter_ref[sl, :] += jnp.sum(wp * t, axis=-1, keepdims=True)
            psum_ref[sl, :] += jnp.sum(wp, axis=-1, keepdims=True)
            tsum_ref[sl, :] += jnp.sum(wt, axis=-1, keepdims=True)

    if needs_mask:
        # Only the very last tile of the very last split reads past the array;
        # every other step takes the cheap unmasked path.
        is_last = jnp.logical_and(s == pl.num_programs(1) - 1,
                                  i == n_per_split - 1)

        @pl.when(jnp.logical_not(is_last))
        def _fast():
            body(None)

        @pl.when(is_last)
        def _tail():
            tile_idx = s * n_per_split + i
            col = tile_idx * tile_n + jax.lax.broadcasted_iota(
                jnp.int32, (1, tile_n), 1)
            body(col < n_valid)
    else:
        body(None)


def dice_channel_sums(pred, target, weight, *, C, F, tile_n=32768):
    """pred/target: (B, C*F, NF) logits & {0,1} targets, weight: (B, F, NF).
       Returns three (C,) f32 sums: intersection, weighted pred sum,
       weighted target sum."""
    B, CF, NF = pred.shape
    assert CF == C * F and weight.shape == (B, F, NF)

    # tile_n is a multiple of 128; if the whole (folded) lane axis fits, take it
    # in one full-dim block (full-dim blocks are exempt from the (8,128) rule).
    tile = NF if NF <= tile_n else tile_n
    total_tiles = pl.cdiv(NF, tile)
    needs_mask = (NF % tile) != 0

    # Core-split: 2 parallel halves of the lane-tile range (v7x has 2 TCs/chip;
    # with small B the batch axis alone leaves one TC idle).  Only when the
    # tile count splits evenly, so the ragged tail stays in one known step.
    n_splits = 2 if (total_tiles % 2 == 0 and total_tiles >= 2) else 1
    n_per_split = total_tiles // n_splits

    kernel = functools.partial(
        _dice_sums_kernel, C=C, F=F, tile_n=tile, n_valid=NF,
        n_per_split=n_per_split, needs_mask=needs_mask)

    # Double-buffered f32 input payload per step + headroom.
    step_bytes = (2 * C * F + F) * tile * 4
    vmem_limit = min(100 << 20, max(32 << 20, int(2.5 * step_bytes) + (8 << 20)))

    out_sds = jax.ShapeDtypeStruct((B, n_splits, C * F, 1), jnp.float32)
    inter, psum, tsum = pl.pallas_call(
        kernel,
        out_shape=(out_sds, out_sds, out_sds),
        grid=(B, n_splits, n_per_split),
        in_specs=[
            pl.BlockSpec((None, C * F, tile),
                         lambda b, s, i: (b, 0, s * n_per_split + i)),
            pl.BlockSpec((None, C * F, tile),
                         lambda b, s, i: (b, 0, s * n_per_split + i)),
            pl.BlockSpec((None, F, tile),
                         lambda b, s, i: (b, 0, s * n_per_split + i)),
        ],
        out_specs=(
            pl.BlockSpec((None, None, C * F, 1), lambda b, s, i: (b, s, 0, 0)),
            pl.BlockSpec((None, None, C * F, 1), lambda b, s, i: (b, s, 0, 0)),
            pl.BlockSpec((None, None, C * F, 1), lambda b, s, i: (b, s, 0, 0)),
        ),
        compiler_params=pltpu.CompilerParams(
            dimension_semantics=("parallel", "parallel", "arbitrary"),
            vmem_limit_bytes=vmem_limit),
    )(pred, target, weight)

    # combine per-batch, per-split, per-fold partials -> (C,)   (tiny, plain JAX)
    inter = inter.reshape(B, n_splits, C, F).sum(axis=(0, 1, 3))
    psum = psum.reshape(B, n_splits, C, F).sum(axis=(0, 1, 3))
    tsum = tsum.reshape(B, n_splits, C, F).sum(axis=(0, 1, 3))
    return inter, psum, tsum


# ----------------------------------------------------------------------------
# Concrete loss_fn instantiations
# ----------------------------------------------------------------------------
def seg_loss_fn(seg_logits, seg_target, weight_map):
    """seg_logits/seg_target: (B, C, H, W) NCHW; weight_map: (B, H, W) weights."""
    B, C, H, W = seg_logits.shape
    assert C == 3, "loss1/loss2/loss3 expect exactly 3 segmentation channels"
    HW = H * W
    # Fold spatial into sublanes by the largest available divisor (8 = native
    # f32 sublane tile); avoids the 3/8-occupancy cliff of a bare F=1 fallback.
    F = next(f for f in (8, 4, 2, 1) if HW % f == 0)
    NF = HW // F

    # Contiguous (free) reshapes -- no HBM transpose/pad, and NO dtype cast
    # (a standalone astype would be a full extra HBM sweep).
    p = seg_logits.reshape(B, C * F, NF)
    t = seg_target.reshape(B, C * F, NF)
    w = weight_map.astype(jnp.float32).reshape(B, F, NF)

    inter, psum, tsum = dice_channel_sums(p, t, w, C=C, F=F)
    eps = 1e-5
    per_channel = 1.0 - (2.0 * inter + eps) / (psum + tsum + eps)   # (C,)
    loss1, loss2, loss3 = per_channel[0], per_channel[1], per_channel[2]
    seg_loss = loss1 + loss2 + loss3
    return seg_loss, loss1, loss2, loss3


def weighted_cross_entropy(logits, labels, class_weights):
    """Class-weighted CE, mean reduction: sum(w_y * nll) / sum(w_y).
    Deliberately plain JAX (pallas_call launch > math at B=2, K=2)."""
    logits = logits.astype(jnp.float32)
    lse = jax.nn.logsumexp(logits, axis=-1)                              # (B,)
    true_logit = jnp.take_along_axis(logits, labels[:, None], axis=-1)[:, 0]
    per_sample = lse - true_logit                                        # (B,)
    wy = class_weights.astype(jnp.float32)[labels]                       # (B,)
    return jnp.sum(wy * per_sample) / jnp.sum(wy)


def mgmt_loss_fn(logits, labels, class_weights):
    return weighted_cross_entropy(logits, labels, class_weights)


# ----------------------------------------------------------------------------
# MultiTaskLossWrapper_1 forward (uncertainty weighting)
# ----------------------------------------------------------------------------
class MultiTaskLossWrapper:
    def __init__(self, task_num, loss_fn):
        self.task_num = task_num
        self.loss_fn = loss_fn
        # nn.Parameter(torch.ones(task_num)) -> deterministic ones
        self.params = jnp.ones((task_num,), dtype=jnp.float32)

    def __call__(self, outputs, targets, weights):
        p0sq = self.params[0] ** 2
        p1sq = self.params[1] ** 2
        std_1 = jnp.log(1.0 + p0sq)
        std_2 = jnp.log(1.0 + p1sq)

        seg_loss, loss1, loss2, loss3 = self.loss_fn[0](outputs[0], targets[0], weights[0])
        # torch.sum(x, -1) on a 0-d tensor is the identity -> plain scalar expression
        seg_loss_1 = 0.5 / p0sq * seg_loss + jnp.log(p0sq)

        mgmt_loss = self.loss_fn[1](outputs[1], targets[1], weights[1])
        mgmt_loss_1 = 0.5 / p1sq * mgmt_loss + jnp.log(p1sq)

        loss = seg_loss_1 + mgmt_loss_1
        return (loss, seg_loss, mgmt_loss, loss1, loss2, loss3,
                std_1, std_2, p0sq, p1sq)


if __name__ == "__main__":
    # Small deterministic example shapes
    B, C, H, W = 2, 3, 16, 16      # segmentation: 3 channels (e.g. WT/TC/ET)
    K = 2                          # mgmt classification classes

    key = jax.random.PRNGKey(0)
    k1, k2, k3, k4, k5, k6 = jax.random.split(key, 6)

    seg_logits = jax.random.normal(k1, (B, C, H, W), dtype=jnp.float32)
    seg_target = (jax.random.uniform(k2, (B, C, H, W)) > 0.5).astype(jnp.float32)
    voxel_weights = jax.random.uniform(k3, (B, H, W), minval=0.5, maxval=1.5).astype(jnp.float32)

    mgmt_logits = jax.random.normal(k4, (B, K), dtype=jnp.float32)
    mgmt_labels = jax.random.randint(k5, (B,), 0, K)
    class_weights = jax.random.uniform(k6, (K,), minval=0.5, maxval=1.5).astype(jnp.float32)

    wrapper = MultiTaskLossWrapper(task_num=2, loss_fn=(seg_loss_fn, mgmt_loss_fn))

    @jax.jit
    def forward(seg_logits, seg_target, voxel_weights, mgmt_logits, mgmt_labels, class_weights):
        outputs = (seg_logits, mgmt_logits)
        targets = (seg_target, mgmt_labels)
        weights = (voxel_weights, class_weights)
        return wrapper(outputs, targets, weights)

    result = forward(seg_logits, seg_target, voxel_weights,
                     mgmt_logits, mgmt_labels, class_weights)
    result = jax.block_until_ready(result)

    (loss, seg_loss, mgmt_loss, l1, l2, l3, std_1, std_2, p0sq, p1sq) = result
    assert all(jnp.isfinite(jnp.asarray(v)).all() for v in result)
    print("KERNEL_OK")
</pallas_src>

<mosaic_0001>
module attributes {stable_mosaic.version = 11 : i64} {
  func.func @_dice_sums_kernel(%arg0: i32, %arg1: i32, %arg2: i32, %arg3: memref<1x24x32xf32, #tpu.memory_space<vmem>>, %arg4: memref<1x24x32xf32, #tpu.memory_space<vmem>>, %arg5: memref<1x8x32xf32, #tpu.memory_space<vmem>>, %arg6: memref<1x1x24x1xf32, #tpu.memory_space<vmem>>, %arg7: memref<1x1x24x1xf32, #tpu.memory_space<vmem>>, %arg8: memref<1x1x24x1xf32, #tpu.memory_space<vmem>>) attributes {dimension_semantics = [#tpu.dimension_semantics<parallel>, #tpu.dimension_semantics<parallel>, #tpu.dimension_semantics<arbitrary>], iteration_bounds = array<i64: 2, 1, 1>, scalar_prefetch = 0 : i64, scratch_operands = 0 : i64, tpu.core_type = #tpu.core_type<tc>, window_params = [{transform_indices = @transform_0, window_bounds = array<i64: 1, 24, 32>}, {transform_indices = @transform_1, window_bounds = array<i64: 1, 24, 32>}, {transform_indices = @transform_2, window_bounds = array<i64: 1, 8, 32>}, {transform_indices = @transform_3, window_bounds = array<i64: 1, 1, 24, 1>}, {transform_indices = @transform_4, window_bounds = array<i64: 1, 1, 24, 1>}, {transform_indices = @transform_5, window_bounds = array<i64: 1, 1, 24, 1>}]} {
    %c0_i32 = arith.constant 0 : i32
    %0 = arith.cmpi eq, %arg2, %c0_i32 : i32
    %1 = arith.extui %0 : i1 to i32
    %c0_i32_0 = arith.constant 0 : i32
    %2 = arith.cmpi ne, %1, %c0_i32_0 : i32
    scf.if %2 {
      %cst_102 = arith.constant 0.000000e+00 : f32
      %113 = vector.broadcast %cst_102 : f32 to vector<24x1xf32>
      %c0_103 = arith.constant 0 : index
      %c0_104 = arith.constant 0 : index
      %c0_105 = arith.constant 0 : index
      %c0_106 = arith.constant 0 : index
      %114 = vector.load %arg6[%c0_103, %c0_104, %c0_105, %c0_106] : memref<1x1x24x1xf32, #tpu.memory_space<vmem>>, vector<1x1x24x1xf32>
      %115 = vector.shape_cast %114 : vector<1x1x24x1xf32> to vector<24x1xf32>
      %116 = vector.shape_cast %113 : vector<24x1xf32> to vector<1x1x24x1xf32>
      tpu.vector_store %arg6[%c0_103, %c0_104, %c0_105, %c0_106], %116 {strides = array<i32>} : memref<1x1x24x1xf32, #tpu.memory_space<vmem>>, vector<1x1x24x1xf32>,
      %cst_107 = arith.constant 0.000000e+00 : f32
      %117 = vector.broadcast %cst_107 : f32 to vector<24x1xf32>
      %c0_108 = arith.constant 0 : index
      %c0_109 = arith.constant 0 : index
      %c0_110 = arith.constant 0 : index
      %c0_111 = arith.constant 0 : index
      %118 = vector.load %arg7[%c0_108, %c0_109, %c0_110, %c0_111] : memref<1x1x24x1xf32, #tpu.memory_space<vmem>>, vector<1x1x24x1xf32>
      %119 = vector.shape_cast %118 : vector<1x1x24x1xf32> to vector<24x1xf32>
      %120 = vector.shape_cast %117 : vector<24x1xf32> to vector<1x1x24x1xf32>
      tpu.vector_store %arg7[%c0_108, %c0_109, %c0_110, %c0_111], %120 {strides = array<i32>} : memref<1x1x24x1xf32, #tpu.memory_space<vmem>>, vector<1x1x24x1xf32>,
      %cst_112 = arith.constant 0.000000e+00 : f32
      %121 = vector.broadcast %cst_112 : f32 to vector<24x1xf32>
      %c0_113 = arith.constant 0 : index
      %c0_114 = arith.constant 0 : index
      %c0_115 = arith.constant 0 : index
      %c0_116 = arith.constant 0 : index
      %122 = vector.load %arg8[%c0_113, %c0_114, %c0_115, %c0_116] : memref<1x1x24x1xf32, #tpu.memory_space<vmem>>, vector<1x1x24x1xf32>
      %123 = vector.shape_cast %122 : vector<1x1x24x1xf32> to vector<24x1xf32>
      %124 = vector.shape_cast %121 : vector<24x1xf32> to vector<1x1x24x1xf32>
      tpu.vector_store %arg8[%c0_113, %c0_114, %c0_115, %c0_116], %124 {strides = array<i32>} : memref<1x1x24x1xf32, #tpu.memory_space<vmem>>, vector<1x1x24x1xf32>,
    } else {
    }
    %c0 = arith.constant 0 : index
    %c0_1 = arith.constant 0 : index
    %c0_2 = arith.constant 0 : index
    %3 = vector.load %arg5[%c0, %c0_1, %c0_2] : memref<1x8x32xf32, #tpu.memory_space<vmem>>, vector<1x8x32xf32>
    %4 = vector.shape_cast %3 : vector<1x8x32xf32> to vector<8x32xf32>
    %c0_3 = arith.constant 0 : index
    %c0_4 = arith.constant 0 : index
    %c0_5 = arith.constant 0 : index
    %5 = vector.load %arg3[%c0_3, %c0_4, %c0_5] : memref<1x24x32xf32, #tpu.memory_space<vmem>>, vector<1x8x32xf32>
    %6 = vector.shape_cast %5 : vector<1x8x32xf32> to vector<8x32xf32>
    %7 = arith.negf %6 : vector<8x32xf32>
    %8 = math.exp %7 : vector<8x32xf32>
    %cst = arith.constant 1.000000e+00 : f32
    %9 = vector.broadcast %cst : f32 to vector<8x32xf32>
    %10 = arith.addf %9, %8 : vector<8x32xf32>
    %11 = arith.divf %9, %10 : vector<8x32xf32>
    %c0_6 = arith.constant 0 : index
    %c0_7 = arith.constant 0 : index
    %c0_8 = arith.constant 0 : index
    %12 = vector.load %arg4[%c0_6, %c0_7, %c0_8] : memref<1x24x32xf32, #tpu.memory_space<vmem>>, vector<1x8x32xf32>
    %13 = vector.shape_cast %12 : vector<1x8x32xf32> to vector<8x32xf32>
    %14 = arith.mulf %4, %11 : vector<8x32xf32>
    %15 = arith.mulf %4, %13 : vector<8x32xf32>
    %c0_9 = arith.constant 0 : index
    %c0_10 = arith.constant 0 : index
    %c0_11 = arith.constant 0 : index
    %c0_12 = arith.constant 0 : index
    %16 = vector.load %arg6[%c0_9, %c0_10, %c0_11, %c0_12] : memref<1x1x24x1xf32, #tpu.memory_space<vmem>>, vector<1x1x8x1xf32>
    %17 = vector.shape_cast %16 : vector<1x1x8x1xf32> to vector<8x1xf32>
    %18 = arith.mulf %14, %13 : vector<8x32xf32>
    %cst_13 = arith.constant dense<0.000000e+00> : vector<8xf32>
    %19 = vector.multi_reduction <add>, %18, %cst_13 [1] : vector<8x32xf32> to vector<8xf32>
    %20 = vector.shape_cast %19 : vector<8xf32> to vector<8x1xf32>
    %21 = arith.addf %17, %20 : vector<8x1xf32>
    %c0_14 = arith.constant 0 : index
    %c0_15 = arith.constant 0 : index
    %c0_16 = arith.constant 0 : index
    %c0_17 = arith.constant 0 : index
    %22 = vector.load %arg6[%c0_14, %c0_15, %c0_16, %c0_17] : memref<1x1x24x1xf32, #tpu.memory_space<vmem>>, vector<1x1x8x1xf32>
    %23 = vector.shape_cast %22 : vector<1x1x8x1xf32> to vector<8x1xf32>
    %24 = vector.shape_cast %21 : vector<8x1xf32> to vector<1x1x8x1xf32>
    tpu.vector_store %arg6[%c0_14, %c0_15, %c0_16, %c0_17], %24 {strides = array<i32>} : memref<1x1x24x1xf32, #tpu.memory_space<vmem>>, vector<1x1x8x1xf32>,
    %c0_18 = arith.constant 0 : index
    %c0_19 = arith.constant 0 : index
    %c0_20 = arith.constant 0 : index
    %c0_21 = arith.constant 0 : index
    %25 = vector.load %arg7[%c0_18, %c0_19, %c0_20, %c0_21] : memref<1x1x24x1xf32, #tpu.memory_space<vmem>>, vector<1x1x8x1xf32>
    %26 = vector.shape_cast %25 : vector<1x1x8x1xf32> to vector<8x1xf32>
    %cst_22 = arith.constant dense<0.000000e+00> : vector<8xf32>
    %27 = vector.multi_reduction <add>, %14, %cst_22 [1] : vector<8x32xf32> to vector<8xf32>
    %28 = vector.shape_cast %27 : vector<8xf32> to vector<8x1xf32>
    %29 = arith.addf %26, %28 : vector<8x1xf32>
    %c0_23 = arith.constant 0 : index
    %c0_24 = arith.constant 0 : index
    %c0_25 = arith.constant 0 : index
    %c0_26 = arith.constant 0 : index
    %30 = vector.load %arg7[%c0_23, %c0_24, %c0_25, %c0_26] : memref<1x1x24x1xf32, #tpu.memory_space<vmem>>, vector<1x1x8x1xf32>
    %31 = vector.shape_cast %30 : vector<1x1x8x1xf32> to vector<8x1xf32>
    %32 = vector.shape_cast %29 : vector<8x1xf32> to vector<1x1x8x1xf32>
    tpu.vector_store %arg7[%c0_23, %c0_24, %c0_25, %c0_26], %32 {strides = array<i32>} : memref<1x1x24x1xf32, #tpu.memory_space<vmem>>, vector<1x1x8x1xf32>,
    %c0_27 = arith.constant 0 : index
    %c0_28 = arith.constant 0 : index
    %c0_29 = arith.constant 0 : index
    %c0_30 = arith.constant 0 : index
    %33 = vector.load %arg8[%c0_27, %c0_28, %c0_29, %c0_30] : memref<1x1x24x1xf32, #tpu.memory_space<vmem>>, vector<1x1x8x1xf32>
    %34 = vector.shape_cast %33 : vector<1x1x8x1xf32> to vector<8x1xf32>
    %cst_31 = arith.constant dense<0.000000e+00> : vector<8xf32>
    %35 = vector.multi_reduction <add>, %15, %cst_31 [1] : vector<8x32xf32> to vector<8xf32>
    %36 = vector.shape_cast %35 : vector<8xf32> to vector<8x1xf32>
    %37 = arith.addf %34, %36 : vector<8x1xf32>
    %c0_32 = arith.constant 0 : index
    %c0_33 = arith.constant 0 : index
    %c0_34 = arith.constant 0 : index
    %c0_35 = arith.constant 0 : index
    %38 = vector.load %arg8[%c0_32, %c0_33, %c0_34, %c0_35] : memref<1x1x24x1xf32, #tpu.memory_space<vmem>>, vector<1x1x8x1xf32>
    %39 = vector.shape_cast %38 : vector<1x1x8x1xf32> to vector<8x1xf32>
    %40 = vector.shape_cast %37 : vector<8x1xf32> to vector<1x1x8x1xf32>
    tpu.vector_store %arg8[%c0_32, %c0_33, %c0_34, %c0_35], %40 {strides = array<i32>} : memref<1x1x24x1xf32, #tpu.memory_space<vmem>>, vector<1x1x8x1xf32>,
    %c0_36 = arith.constant 0 : index
    %c8 = arith.constant 8 : index
    %c0_37 = arith.constant 0 : index
    %41 = vector.load %arg3[%c0_36, %c8, %c0_37] : memref<1x24x32xf32, #tpu.memory_space<vmem>>, vector<1x8x32xf32>
    %42 = vector.shape_cast %41 : vector<1x8x32xf32> to vector<8x32xf32>
    %43 = arith.negf %42 : vector<8x32xf32>
    %44 = math.exp %43 : vector<8x32xf32>
    %cst_38 = arith.constant 1.000000e+00 : f32
    %45 = vector.broadcast %cst_38 : f32 to vector<8x32xf32>
    %46 = arith.addf %45, %44 : vector<8x32xf32>
    %47 = arith.divf %45, %46 : vector<8x32xf32>
    %c0_39 = arith.constant 0 : index
    %c8_40 = arith.constant 8 : index
    %c0_41 = arith.constant 0 : index
    %48 = vector.load %arg4[%c0_39, %c8_40, %c0_41] : memref<1x24x32xf32, #tpu.memory_space<vmem>>, vector<1x8x32xf32>
    %49 = vector.shape_cast %48 : vector<1x8x32xf32> to vector<8x32xf32>
    %50 = arith.mulf %4, %47 : vector<8x32xf32>
    %51 = arith.mulf %4, %49 : vector<8x32xf32>
    %c0_42 = arith.constant 0 : index
    %c0_43 = arith.constant 0 : index
    %c8_44 = arith.constant 8 : index
    %c0_45 = arith.constant 0 : index
    %52 = vector.load %arg6[%c0_42, %c0_43, %c8_44, %c0_45] : memref<1x1x24x1xf32, #tpu.memory_space<vmem>>, vector<1x1x8x1xf32>
    %53 = vector.shape_cast %52 : vector<1x1x8x1xf32> to vector<8x1xf32>
    %54 = arith.mulf %50, %49 : vector<8x32xf32>
    %cst_46 = arith.constant dense<0.000000e+00> : vector<8xf32>
    %55 = vector.multi_reduction <add>, %54, %cst_46 [1] : vector<8x32xf32> to vector<8xf32>
    %56 = vector.shape_cast %55 : vector<8xf32> to vector<8x1xf32>
    %57 = arith.addf %53, %56 : vector<8x1xf32>
    %c0_47 = arith.constant 0 : index
    %c0_48 = arith.constant 0 : index
    %c8_49 = arith.constant 8 : index
    %c0_50 = arith.constant 0 : index
    %58 = vector.load %arg6[%c0_47, %c0_48, %c8_49, %c0_50] : memref<1x1x24x1xf32, #tpu.memory_space<vmem>>, vector<1x1x8x1xf32>
    %59 = vector.shape_cast %58 : vector<1x1x8x1xf32> to vector<8x1xf32>
    %60 = vector.shape_cast %57 : vector<8x1xf32> to vector<1x1x8x1xf32>
    tpu.vector_store %arg6[%c0_47, %c0_48, %c8_49, %c0_50], %60 {strides = array<i32>} : memref<1x1x24x1xf32, #tpu.memory_space<vmem>>, vector<1x1x8x1xf32>,
    %c0_51 = arith.constant 0 : index
    %c0_52 = arith.constant 0 : index
    %c8_53 = arith.constant 8 : index
    %c0_54 = arith.constant 0 : index
    %61 = vector.load %arg7[%c0_51, %c0_52, %c8_53, %c0_54] : memref<1x1x24x1xf32, #tpu.memory_space<vmem>>, vector<1x1x8x1xf32>
    %62 = vector.shape_cast %61 : vector<1x1x8x1xf32> to vector<8x1xf32>
    %cst_55 = arith.constant dense<0.000000e+00> : vector<8xf32>
    %63 = vector.multi_reduction <add>, %50, %cst_55 [1] : vector<8x32xf32> to vector<8xf32>
    %64 = vector.shape_cast %63 : vector<8xf32> to vector<8x1xf32>
    %65 = arith.addf %62, %64 : vector<8x1xf32>
    %c0_56 = arith.constant 0 : index
    %c0_57 = arith.constant 0 : index
    %c8_58 = arith.constant 8 : index
    %c0_59 = arith.constant 0 : index
    %66 = vector.load %arg7[%c0_56, %c0_57, %c8_58, %c0_59] : memref<1x1x24x1xf32, #tpu.memory_space<vmem>>, vector<1x1x8x1xf32>
    %67 = vector.shape_cast %66 : vector<1x1x8x1xf32> to vector<8x1xf32>
    %68 = vector.shape_cast %65 : vector<8x1xf32> to vector<1x1x8x1xf32>
    tpu.vector_store %arg7[%c0_56, %c0_57, %c8_58, %c0_59], %68 {strides = array<i32>} : memref<1x1x24x1xf32, #tpu.memory_space<vmem>>, vector<1x1x8x1xf32>,
    %c0_60 = arith.constant 0 : index
    %c0_61 = arith.constant 0 : index
    %c8_62 = arith.constant 8 : index
    %c0_63 = arith.constant 0 : index
    %69 = vector.load %arg8[%c0_60, %c0_61, %c8_62, %c0_63] : memref<1x1x24x1xf32, #tpu.memory_space<vmem>>, vector<1x1x8x1xf32>
    %70 = vector.shape_cast %69 : vector<1x1x8x1xf32> to vector<8x1xf32>
    %cst_64 = arith.constant dense<0.000000e+00> : vector<8xf32>
    %71 = vector.multi_reduction <add>, %51, %cst_64 [1] : vector<8x32xf32> to vector<8xf32>
    %72 = vector.shape_cast %71 : vector<8xf32> to vector<8x1xf32>
    %73 = arith.addf %70, %72 : vector<8x1xf32>
    %c0_65 = arith.constant 0 : index
    %c0_66 = arith.constant 0 : index
    %c8_67 = arith.constant 8 : index
    %c0_68 = arith.constant 0 : index
    %74 = vector.load %arg8[%c0_65, %c0_66, %c8_67, %c0_68] : memref<1x1x24x1xf32, #tpu.memory_space<vmem>>, vector<1x1x8x1xf32>
    %75 = vector.shape_cast %74 : vector<1x1x8x1xf32> to vector<8x1xf32>
    %76 = vector.shape_cast %73 : vector<8x1xf32> to vector<1x1x8x1xf32>
    tpu.vector_store %arg8[%c0_65, %c0_66, %c8_67, %c0_68], %76 {strides = array<i32>} : memref<1x1x24x1xf32, #tpu.memory_space<vmem>>, vector<1x1x8x1xf32>,
    %c0_69 = arith.constant 0 : index
    %c16 = arith.constant 16 : index
    %c0_70 = arith.constant 0 : index
    %77 = vector.load %arg3[%c0_69, %c16, %c0_70] : memref<1x24x32xf32, #tpu.memory_space<vmem>>, vector<1x8x32xf32>
    %78 = vector.shape_cast %77 : vector<1x8x32xf32> to vector<8x32xf32>
    %79 = arith.negf %78 : vector<8x32xf32>
    %80 = math.exp %79 : vector<8x32xf32>
    %cst_71 = arith.constant 1.000000e+00 : f32
    %81 = vector.broadcast %cst_71 : f32 to vector<8x32xf32>
    %82 = arith.addf %81, %80 : vector<8x32xf32>
    %83 = arith.divf %81, %82 : vector<8x32xf32>
    %c0_72 = arith.constant 0 : index
    %c16_73 = arith.constant 16 : index
    %c0_74 = arith.constant 0 : index
    %84 = vector.load %arg4[%c0_72, %c16_73, %c0_74] : memref<1x24x32xf32, #tpu.memory_space<vmem>>, vector<1x8x32xf32>
    %85 = vector.shape_cast %84 : vector<1x8x32xf32> to vector<8x32xf32>
    %86 = arith.mulf %4, %83 : vector<8x32xf32>
    %87 = arith.mulf %4, %85 : vector<8x32xf32>
    %c0_75 = arith.constant 0 : index
    %c0_76 = arith.constant 0 : index
    %c16_77 = arith.constant 16 : index
    %c0_78 = arith.constant 0 : index
    %88 = vector.load %arg6[%c0_75, %c0_76, %c16_77, %c0_78] : memref<1x1x24x1xf32, #tpu.memory_space<vmem>>, vector<1x1x8x1xf32>
    %89 = vector.shape_cast %88 : vector<1x1x8x1xf32> to vector<8x1xf32>
    %90 = arith.mulf %86, %85 : vector<8x32xf32>
    %cst_79 = arith.constant dense<0.000000e+00> : vector<8xf32>
    %91 = vector.multi_reduction <add>, %90, %cst_79 [1] : vector<8x32xf32> to vector<8xf32>
    %92 = vector.shape_cast %91 : vector<8xf32> to vector<8x1xf32>
    %93 = arith.addf %89, %92 : vector<8x1xf32>
    %c0_80 = arith.constant 0 : index
    %c0_81 = arith.constant 0 : index
    %c16_82 = arith.constant 16 : index
    %c0_83 = arith.constant 0 : index
    %94 = vector.load %arg6[%c0_80, %c0_81, %c16_82, %c0_83] : memref<1x1x24x1xf32, #tpu.memory_space<vmem>>, vector<1x1x8x1xf32>
    %95 = vector.shape_cast %94 : vector<1x1x8x1xf32> to vector<8x1xf32>
    %96 = vector.shape_cast %93 : vector<8x1xf32> to vector<1x1x8x1xf32>
    tpu.vector_store %arg6[%c0_80, %c0_81, %c16_82, %c0_83], %96 {strides = array<i32>} : memref<1x1x24x1xf32, #tpu.memory_space<vmem>>, vector<1x1x8x1xf32>,
    %c0_84 = arith.constant 0 : index
    %c0_85 = arith.constant 0 : index
    %c16_86 = arith.constant 16 : index
    %c0_87 = arith.constant 0 : index
    %97 = vector.load %arg7[%c0_84, %c0_85, %c16_86, %c0_87] : memref<1x1x24x1xf32, #tpu.memory_space<vmem>>, vector<1x1x8x1xf32>
    %98 = vector.shape_cast %97 : vector<1x1x8x1xf32> to vector<8x1xf32>
    %cst_88 = arith.constant dense<0.000000e+00> : vector<8xf32>
    %99 = vector.multi_reduction <add>, %86, %cst_88 [1] : vector<8x32xf32> to vector<8xf32>
    %100 = vector.shape_cast %99 : vector<8xf32> to vector<8x1xf32>
    %101 = arith.addf %98, %100 : vector<8x1xf32>
    %c0_89 = arith.constant 0 : index
    %c0_90 = arith.constant 0 : index
    %c16_91 = arith.constant 16 : index
    %c0_92 = arith.constant 0 : index
    %102 = vector.load %arg7[%c0_89, %c0_90, %c16_91, %c0_92] : memref<1x1x24x1xf32, #tpu.memory_space<vmem>>, vector<1x1x8x1xf32>
    %103 = vector.shape_cast %102 : vector<1x1x8x1xf32> to vector<8x1xf32>
    %104 = vector.shape_cast %101 : vector<8x1xf32> to vector<1x1x8x1xf32>
    tpu.vector_store %arg7[%c0_89, %c0_90, %c16_91, %c0_92], %104 {strides = array<i32>} : memref<1x1x24x1xf32, #tpu.memory_space<vmem>>, vector<1x1x8x1xf32>,
    %c0_93 = arith.constant 0 : index
    %c0_94 = arith.constant 0 : index
    %c16_95 = arith.constant 16 : index
    %c0_96 = arith.constant 0 : index
    %105 = vector.load %arg8[%c0_93, %c0_94, %c16_95, %c0_96] : memref<1x1x24x1xf32, #tpu.memory_space<vmem>>, vector<1x1x8x1xf32>
    %106 = vector.shape_cast %105 : vector<1x1x8x1xf32> to vector<8x1xf32>
    %cst_97 = arith.constant dense<0.000000e+00> : vector<8xf32>
    %107 = vector.multi_reduction <add>, %87, %cst_97 [1] : vector<8x32xf32> to vector<8xf32>
    %108 = vector.shape_cast %107 : vector<8xf32> to vector<8x1xf32>
    %109 = arith.addf %106, %108 : vector<8x1xf32>
    %c0_98 = arith.constant 0 : index
    %c0_99 = arith.constant 0 : index
    %c16_100 = arith.constant 16 : index
    %c0_101 = arith.constant 0 : index
    %110 = vector.load %arg8[%c0_98, %c0_99, %c16_100, %c0_101] : memref<1x1x24x1xf32, #tpu.memory_space<vmem>>, vector<1x1x8x1xf32>
    %111 = vector.shape_cast %110 : vector<1x1x8x1xf32> to vector<8x1xf32>
    %112 = vector.shape_cast %109 : vector<8x1xf32> to vector<1x1x8x1xf32>
    tpu.vector_store %arg8[%c0_98, %c0_99, %c16_100, %c0_101], %112 {strides = array<i32>} : memref<1x1x24x1xf32, #tpu.memory_space<vmem>>, vector<1x1x8x1xf32>,
    return
  }
  func.func @transform_0(%arg0: i32, %arg1: i32, %arg2: i32) -> (i32, i32, i32) {
    %c1_i32 = arith.constant 1 : i32
    %0 = arith.muli %arg1, %c1_i32 : i32
    %1 = arith.addi %0, %arg2 : i32
    %c0_i32 = arith.constant 0 : i32
    %c0_i32_0 = arith.constant 0 : i32
    return %arg0, %c0_i32, %1 : i32, i32, i32
  }
  func.func @transform_1(%arg0: i32, %arg1: i32, %arg2: i32) -> (i32, i32, i32) {
    %c1_i32 = arith.constant 1 : i32
    %0 = arith.muli %arg1, %c1_i32 : i32
    %1 = arith.addi %0, %arg2 : i32
    %c0_i32 = arith.constant 0 : i32
    %c0_i32_0 = arith.constant 0 : i32
    return %arg0, %c0_i32, %1 : i32, i32, i32
  }
  func.func @transform_2(%arg0: i32, %arg1: i32, %arg2: i32) -> (i32, i32, i32) {
    %c1_i32 = arith.constant 1 : i32
    %0 = arith.muli %arg1, %c1_i32 : i32
    %1 = arith.addi %0, %arg2 : i32
    %c0_i32 = arith.constant 0 : i32
    %c0_i32_0 = arith.constant 0 : i32
    return %arg0, %c0_i32, %1 : i32, i32, i32
  }
  func.func @transform_3(%arg0: i32, %arg1: i32, %arg2: i32) -> (i32, i32, i32, i32) {
    %c0_i32 = arith.constant 0 : i32
    %c0_i32_0 = arith.constant 0 : i32
    %c0_i32_1 = arith.constant 0 : i32
    return %arg0, %arg1, %c0_i32, %c0_i32_0 : i32, i32, i32, i32
  }
  func.func @transform_4(%arg0: i32, %arg1: i32, %arg2: i32) -> (i32, i32, i32, i32) {
    %c0_i32 = arith.constant 0 : i32
    %c0_i32_0 = arith.constant 0 : i32
    %c0_i32_1 = arith.constant 0 : i32
    return %arg0, %arg1, %c0_i32, %c0_i32_0 : i32, i32, i32, i32
  }
  func.func @transform_5(%arg0: i32, %arg1: i32, %arg2: i32) -> (i32, i32, i32, i32) {
    %c0_i32 = arith.constant 0 : i32
    %c0_i32_0 = arith.constant 0 : i32
    %c0_i32_1 = arith.constant 0 : i32
    return %arg0, %arg1, %c0_i32, %c0_i32_0 : i32, i32, i32, i32
  }
}

</mosaic_0001>

<llo_original>
// kernel: forward.1
$region0: #{forward.1}
  #allocation0 [shape = 'u32[]', space=smem, size = 0x4, offset = 0x4, fixed_abs, tag = 'smem constant byte address 0x4 - core index']
  #allocation1 [shape = 'u32[144,128]{1,0:T(1,128)}', space=vmem, size = 0x12000, scoped, tag = 'internal scratch']
  %s0 = inlined_call_operand.vmem [shape: f32[2,24,32], index: 0, kind: input, shape index: {}]
  %s1 = inlined_call_operand.vmem [shape: f32[2,24,32], index: 1, kind: input, shape index: {}]
  %s2 = inlined_call_operand.vmem [shape: f32[2,8,32], index: 2, kind: input, shape index: {}]
  %s3 = inlined_call_operand.vmem [shape: f32[2,1,24,1], index: 3, kind: output, shape index: {0}]
  %s4 = inlined_call_operand.vmem [shape: f32[2,1,24,1], index: 4, kind: output, shape index: {1}]
  %s5 = inlined_call_operand.vmem [shape: f32[2,1,24,1], index: 5, kind: output, shape index: {2}]
  %6 = xla_tuple %s3, %s4, %s5
  %s7 = sld [smem:[#allocation0]]
  $region65: #{forward.1} parent=0
    _
  %s9 = ssub.s32 1, %s7
  %s10 = scalar_select 0, %s9, %s7
  loop: start=0, step=1, limit=4
  $region2: #{forward.1} parent=0 // loop_pre_header
    _
  $region3: #{forward.1} parent=0 // loop_header
    %s12 = sphi 0, %s16
    %p13 = scmp.ge.s32.totalorder %s12, 4
    %s19 = sphi 0, %s38
    %s20 = sphi 0, %s34
    %s21 = sphi 0, %s30
    %s22 = sphi 0, %s19
    %s23 = sphi 0, %s20
    %s24 = sphi 0, %s21
    %s25 = sphi 0, %s22
    %s26 = sphi 0, %s23
    %s27 = sphi 0, %s24
    %s45 = sphi 0, %s47
    %s48 = sphi 0, %s45
    %s49 = sphi 0, %s48
    %s65 = sphi 0, %s49
    %s75 = sphi 0, %s77
    %s78 = sphi 0, %s75
    %s79 = sphi 0, %s78
    %s95 = sphi 0, %s79
    %s105 = sphi 0, %s107
    %s108 = sphi 0, %s105
    %s109 = sphi 0, %s108
    %s125 = sphi 0, %s109
    %s133 = sphi 0, %s135
    %s136 = sphi 0, %s133
    %s137 = sphi 0, %s136
    %s153 = sphi 0, %s137
    %s161 = sphi 0, %s163
    %s164 = sphi 0, %s161
    %s165 = sphi 0, %s164
    %s181 = sphi 0, %s165
    %s189 = sphi 0, %s191
    %s192 = sphi 0, %s189
    %s193 = sphi 0, %s192
    %s209 = sphi 0, %s193
  $region4: #{forward.1} parent=0 // loop_header_branch
    %15 = sbr.rel (%p13) target = $region8
  $region5: #{forward.1} parent=0 // loop_body
    %s17 = ssub.s32 %s12, 1
    %s18 = ssub.s32 %s12, 2
    %s28 = sadd.s32 1, %s21
    %p29 = scmp.ge.s32.totalorder %s28, 1
    %s30 = scalar_select %p29, 0, %s28
    %s31 = sadd.s32 1, %s20
    %s32 = scalar_select %p29, %s31, %s20
    %p33 = scmp.ge.s32.totalorder %s32, 1
    %s34 = scalar_select %p33, 0, %s32
    %s35 = sadd.s32 1, %s19
    %s36 = scalar_select %p33, %s35, %s19
    %p37 = scmp.ge.s32.totalorder %s36, 2
    %s38 = scalar_select %p37, 0, %s36
    %s39 = sadd.s32 %s20, %s21
    %s40 = sadd.s32 %s34, %s30
    %s41 = ssub.s32 %s19, %s38
    %s42 = ssub.s32 %s39, %s40
    %s43 = sor.u32 %s41, %s42
    %p44 = scmp.eq.s32.totalorder %s43, 0
    %s46 = sadd.s32 %s45, 1
    %s47 = scalar_select %p44, %s45, %s46
    %p50 = pneg %p44
    %p51 = scmp.eq.s32.totalorder %s12, 1
    %p52 = por %p50, %p51
    %p53 = scmp.ne.s32.totalorder %s45, %s48
    %p54 = scmp.eq.s32.totalorder %s12, 0
    %p55 = por %p53, %p54
    %p56 = scmp.ne.s32.totalorder %s45, %s48
    %p57 = scmp.eq.s32.totalorder %s17, 1
    %p58 = por %p56, %p57
    %p59 = scmp.ne.s32.totalorder %s48, %s49
    %p60 = scmp.eq.s32.totalorder %s17, 0
    %p61 = por %p59, %p60
    %p62 = scmp.ne.s32.totalorder %s48, %s49
    %p63 = scmp.eq.s32.totalorder %s18, 1
    %p64 = por %p62, %p63
    %p66 = scmp.ne.s32.totalorder %s49, %s65
    %p67 = scmp.eq.s32.totalorder %s18, 0
    %p68 = por %p66, %p67
    %s69 = sadd.s32 %s20, %s21
    %s70 = sadd.s32 %s34, %s30
    %s71 = ssub.s32 %s19, %s38
    %s72 = ssub.s32 %s69, %s70
    %s73 = sor.u32 %s71, %s72
    %p74 = scmp.eq.s32.totalorder %s73, 0
    %s76 = sadd.s32 %s75, 1
    %s77 = scalar_select %p74, %s75, %s76
    %p80 = pneg %p74
    %p81 = scmp.eq.s32.totalorder %s12, 1
    %p82 = por %p80, %p81
    %p83 = scmp.ne.s32.totalorder %s75, %s78
    %p84 = scmp.eq.s32.totalorder %s12, 0
    %p85 = por %p83, %p84
    %p86 = scmp.ne.s32.totalorder %s75, %s78
    %p87 = scmp.eq.s32.totalorder %s17, 1
    %p88 = por %p86, %p87
    %p89 = scmp.ne.s32.totalorder %s78, %s79
    %p90 = scmp.eq.s32.totalorder %s17, 0
    %p91 = por %p89, %p90
    %p92 = scmp.ne.s32.totalorder %s78, %s79
    %p93 = scmp.eq.s32.totalorder %s18, 1
    %p94 = por %p92, %p93
    %p96 = scmp.ne.s32.totalorder %s79, %s95
    %p97 = scmp.eq.s32.totalorder %s18, 0
    %p98 = por %p96, %p97
    %s99 = sadd.s32 %s20, %s21
    %s100 = sadd.s32 %s34, %s30
    %s101 = ssub.s32 %s19, %s38
    %s102 = ssub.s32 %s99, %s100
    %s103 = sor.u32 %s101, %s102
    %p104 = scmp.eq.s32.totalorder %s103, 0
    %s106 = sadd.s32 %s105, 1
    %s107 = scalar_select %p104, %s105, %s106
    %p110 = pneg %p104
    %p111 = scmp.eq.s32.totalorder %s12, 1
    %p112 = por %p110, %p111
    %p113 = scmp.ne.s32.totalorder %s105, %s108
    %p114 = scmp.eq.s32.totalorder %s12, 0
    %p115 = por %p113, %p114
    %p116 = scmp.ne.s32.totalorder %s105, %s108
    %p117 = scmp.eq.s32.totalorder %s17, 1
    %p118 = por %p116, %p117
    %p119 = scmp.ne.s32.totalorder %s108, %s109
    %p120 = scmp.eq.s32.totalorder %s17, 0
    %p121 = por %p119, %p120
    %p122 = scmp.ne.s32.totalorder %s108, %s109
    %p123 = scmp.eq.s32.totalorder %s18, 1
    %p124 = por %p122, %p123
    %p126 = scmp.ne.s32.totalorder %s109, %s125
    %p127 = scmp.eq.s32.totalorder %s18, 0
    %p128 = por %p126, %p127
    %s129 = ssub.s32 %s19, %s38
    %s130 = ssub.s32 %s20, %s34
    %s131 = sor.u32 %s129, %s130
    %p132 = scmp.eq.s32.totalorder %s131, 0
    %s134 = sadd.s32 %s133, 1
    %s135 = scalar_select %p132, %s133, %s134
    %p138 = pneg %p132
    %p139 = scmp.eq.s32.totalorder %s12, 1
    %p140 = por %p138, %p139
    %p141 = scmp.ne.s32.totalorder %s133, %s136
    %p142 = scmp.eq.s32.totalorder %s12, 0
    %p143 = por %p141, %p142
    %p144 = scmp.ne.s32.totalorder %s133, %s136
    %p145 = scmp.eq.s32.totalorder %s17, 1
    %p146 = por %p144, %p145
    %p147 = scmp.ne.s32.totalorder %s136, %s137
    %p148 = scmp.eq.s32.totalorder %s17, 0
    %p149 = por %p147, %p148
    %p150 = scmp.ne.s32.totalorder %s136, %s137
    %p151 = scmp.eq.s32.totalorder %s18, 1
    %p152 = por %p150, %p151
    %p154 = scmp.ne.s32.totalorder %s137, %s153
    %p155 = scmp.eq.s32.totalorder %s18, 0
    %p156 = por %p154, %p155
    %s157 = ssub.s32 %s19, %s38
    %s158 = ssub.s32 %s20, %s34
    %s159 = sor.u32 %s157, %s158
    %p160 = scmp.eq.s32.totalorder %s159, 0
    %s162 = sadd.s32 %s161, 1
    %s163 = scalar_select %p160, %s161, %s162
    %p166 = pneg %p160
    %p167 = scmp.eq.s32.totalorder %s12, 1
    %p168 = por %p166, %p167
    %p169 = scmp.ne.s32.totalorder %s161, %s164
    %p170 = scmp.eq.s32.totalorder %s12, 0
    %p171 = por %p169, %p170
    %p172 = scmp.ne.s32.totalorder %s161, %s164
    %p173 = scmp.eq.s32.totalorder %s17, 1
    %p174 = por %p172, %p173
    %p175 = scmp.ne.s32.totalorder %s164, %s165
    %p176 = scmp.eq.s32.totalorder %s17, 0
    %p177 = por %p175, %p176
    %p178 = scmp.ne.s32.totalorder %s164, %s165
    %p179 = scmp.eq.s32.totalorder %s18, 1
    %p180 = por %p178, %p179
    %p182 = scmp.ne.s32.totalorder %s165, %s181
    %p183 = scmp.eq.s32.totalorder %s18, 0
    %p184 = por %p182, %p183
    %s185 = ssub.s32 %s19, %s38
    %s186 = ssub.s32 %s20, %s34
    %s187 = sor.u32 %s185, %s186
    %p188 = scmp.eq.s32.totalorder %s187, 0
    %s190 = sadd.s32 %s189, 1
    %s191 = scalar_select %p188, %s189, %s190
    %p194 = pneg %p188
    %p195 = scmp.eq.s32.totalorder %s12, 1
    %p196 = por %p194, %p195
    %p197 = scmp.ne.s32.totalorder %s189, %s192
    %p198 = scmp.eq.s32.totalorder %s12, 0
    %p199 = por %p197, %p198
    %p200 = scmp.ne.s32.totalorder %s189, %s192
    %p201 = scmp.eq.s32.totalorder %s17, 1
    %p202 = por %p200, %p201
    %p203 = scmp.ne.s32.totalorder %s192, %s193
    %p204 = scmp.eq.s32.totalorder %s17, 0
    %p205 = por %p203, %p204
    %p206 = scmp.ne.s32.totalorder %s192, %s193
    %p207 = scmp.eq.s32.totalorder %s18, 1
    %p208 = por %p206, %p207
    %p210 = scmp.ne.s32.totalorder %s193, %s209
    %p211 = scmp.eq.s32.totalorder %s18, 0
    %p212 = por %p210, %p211
    %p213 = scmp.le.s32.totalorder 1, %s12
    %p214 = scmp.lt.s32.totalorder %s12, 3
    %p215 = pnand %p213, %p214
    %p216 = pneg %p215
    // Predicated region
    $region9: #{forward.1} parent=5 // pred_check
      _
    $region10: #{forward.1} parent=5 // pred_check_branch
      %218 = sbr.rel (%p215) target = $region12
    $region11: #{forward.1} parent=5 // pred_region
      %s219 = ssub.s32 %s12, 1
    $region12: #{forward.1} parent=5 // pred_fallthru
      _
    %p220 = scmp.lt.s32.totalorder %s12, 2
    // Predicated region
    $region13: #{forward.1} parent=5 // pred_check
      %p221 = pneg %p220
    $region14: #{forward.1} parent=5 // pred_check_branch
      %223 = sbr.rel (%p221) target = $region16
    $region15: #{forward.1} parent=5 // pred_region
      // Predicated region
      $region17: #{forward.1} parent=15 // pred_check
        %p224 = pneg %p55
      $region18: #{forward.1} parent=15 // pred_check_branch
        %226 = sbr.rel (%p224) target = $region20
      $region19: #{forward.1} parent=15 // pred_region
        %s227 = sadd.s32 %s20, %s21
        %p228 = scmp.lt.s32.totalorder %s19, 1
        %s229 = scalar_select %p228, %s19, 1
        %p230 = scmp.lt.s32.totalorder %s227, 0
        %s231 = scalar_select %p230, %s227, 0
        %s232 = smul.addr %s229, 3
        %s233 = sadd.s32 %s231, %s232
        %s234 = smul.addr %s233, 8
        %s235 = scalar_lea.vmem %s0, %s234
        %s236 = sadd.s32 %s20, %s21
      $region20: #{forward.1} parent=15 // pred_fallthru
        _
      // Predicated region
      $region21: #{forward.1} parent=15 // pred_check
        %p237 = pneg %p85
      $region22: #{forward.1} parent=15 // pred_check_branch
        %239 = sbr.rel (%p237) target = $region24
      $region23: #{forward.1} parent=15 // pred_region
        %s240 = sadd.s32 %s20, %s21
        %p241 = scmp.lt.s32.totalorder %s19, 1
        %s242 = scalar_select %p241, %s19, 1
        %p243 = scmp.lt.s32.totalorder %s240, 0
        %s244 = scalar_select %p243, %s240, 0
        %s245 = smul.addr %s242, 3
        %s246 = sadd.s32 %s244, %s245
        %s247 = smul.addr %s246, 8
        %s248 = scalar_lea.vmem %s1, %s247
        %s249 = sadd.s32 %s20, %s21
      $region24: #{forward.1} parent=15 // pred_fallthru
        _
      // Predicated region
      $region25: #{forward.1} parent=15 // pred_check
        %p250 = pneg %p115
      $region26: #{forward.1} parent=15 // pred_check_branch
        %252 = sbr.rel (%p250) target = $region28
      $region27: #{forward.1} parent=15 // pred_region
        %s253 = sadd.s32 %s20, %s21
        %p254 = scmp.lt.s32.totalorder %s19, 1
        %s255 = scalar_select %p254, %s19, 1
        %p256 = scmp.lt.s32.totalorder %s253, 0
        %s257 = scalar_select %p256, %s253, 0
        %s258 = sadd.s32 %s257, %s255
        %s259 = smul.addr %s258, 8
        %s260 = scalar_lea.vmem %s2, %s259
        %s261 = sadd.s32 %s20, %s21
      $region28: #{forward.1} parent=15 // pred_fallthru
        _
    $region16: #{forward.1} parent=5 // pred_fallthru
      _
    %p262 = scmp.le.s32.totalorder 1, %s12
    %p263 = scmp.lt.s32.totalorder %s12, 3
    %p264 = pnand %p262, %p263
    %p265 = pneg %p264
    // Predicated region
    $region29: #{forward.1} parent=5 // pred_check
      _
    $region30: #{forward.1} parent=5 // pred_check_branch
      %267 = sbr.rel (%p264) target = $region32
    $region31: #{forward.1} parent=5 // pred_region
      %s268 = ssub.s32 %s12, 1
      %s269 = sadd.s32 %s23, %s24
      %p270 = scmp.lt.s32.totalorder %s22, 1
      %s271 = scalar_select %p270, %s22, 1
      %p272 = scmp.lt.s32.totalorder %s269, 0
      %s273 = scalar_select %p272, %s269, 0
      %s274 = smul.addr %s271, 3
      %s275 = sadd.s32 %s273, %s274
      %s276 = smul.addr %s275, 8
      %s277 = scalar_lea.vmem %s0, %s276
      %p278 = pneg %p61
      %p279 = pneg %p58
      %s280 = sadd.s32 %s23, %s24
      %p281 = scmp.lt.s32.totalorder %s22, 1
      %s282 = scalar_select %p281, %s22, 1
      %p283 = scmp.lt.s32.totalorder %s280, 0
      %s284 = scalar_select %p283, %s280, 0
      %s285 = smul.addr %s282, 3
      %s286 = sadd.s32 %s284, %s285
      %s287 = smul.addr %s286, 8
      %s288 = scalar_lea.vmem %s1, %s287
      %p289 = pneg %p91
      %p290 = pneg %p88
      %s291 = sadd.s32 %s23, %s24
      %p292 = scmp.lt.s32.totalorder %s22, 1
      %s293 = scalar_select %p292, %s22, 1
      %p294 = scmp.lt.s32.totalorder %s291, 0
      %s295 = scalar_select %p294, %s291, 0
      %s296 = sadd.s32 %s295, %s293
      %s297 = smul.addr %s296, 8
      %s298 = scalar_lea.vmem %s2, %s297
      %p299 = pneg %p121
      %p300 = pneg %p118
      %p301 = pneg %p149
      %p302 = pneg %p146
      %p303 = scmp.lt.s32.totalorder %s22, 1
      %s304 = scalar_select %p303, %s22, 1
      %p305 = scmp.lt.s32.totalorder %s23, 0
      %s306 = scalar_select %p305, %s23, 0
      %s307 = smul.addr %s306, 3
      %s308 = smul.addr %s304, 3
      %s309 = sadd.s32 %s307, %s308
      %s310 = smul.addr %s309, 8
      %s311 = scalar_lea.vmem %s3, %s310
      %p312 = pneg %p177
      %p313 = pneg %p174
      %p314 = scmp.lt.s32.totalorder %s22, 1
      %s315 = scalar_select %p314, %s22, 1
      %p316 = scmp.lt.s32.totalorder %s23, 0
      %s317 = scalar_select %p316, %s23, 0
      %s318 = smul.addr %s317, 3
      %s319 = smul.addr %s315, 3
      %s320 = sadd.s32 %s318, %s319
      %s321 = smul.addr %s320, 8
      %s322 = scalar_lea.vmem %s4, %s321
      %p323 = pneg %p205
      %p324 = pneg %p202
      %p325 = scmp.lt.s32.totalorder %s22, 1
      %s326 = scalar_select %p325, %s22, 1
      %p327 = scmp.lt.s32.totalorder %s23, 0
      %s328 = scalar_select %p327, %s23, 0
      %s329 = smul.addr %s328, 3
      %s330 = smul.addr %s326, 3
      %s331 = sadd.s32 %s329, %s330
      %s332 = smul.addr %s331, 8
      %s333 = scalar_lea.vmem %s5, %s332
      %s334 = sadd.s32 %s23, %s24
      %p335 = scmp.lt.s32.totalorder %s22, 1
      %s336 = scalar_select %p335, %s22, 1
      %p337 = scmp.lt.s32.totalorder %s334, 0
      %s338 = scalar_select %p337, %s334, 0
      %s339 = smul.addr %s336, 3
      %s340 = sadd.s32 %s338, %s339
      %s341 = smul.addr %s340, 8
      %s342 = scalar_lea.vmem %s0, %s341
      %s343 = sadd.s32 %s23, %s24
      %s344 = sadd.s32 %s23, %s24
      %p345 = scmp.lt.s32.totalorder %s22, 1
      %s346 = scalar_select %p345, %s22, 1
      %p347 = scmp.lt.s32.totalorder %s344, 0
      %s348 = scalar_select %p347, %s344, 0
      %s349 = smul.addr %s346, 3
      %s350 = sadd.s32 %s348, %s349
      %s351 = smul.addr %s350, 8
      %s352 = scalar_lea.vmem %s1, %s351
      %s353 = sadd.s32 %s23, %s24
      %s354 = sadd.s32 %s23, %s24
      %p355 = scmp.lt.s32.totalorder %s22, 1
      %s356 = scalar_select %p355, %s22, 1
      %p357 = scmp.lt.s32.totalorder %s354, 0
      %s358 = scalar_select %p357, %s354, 0
      %s359 = sadd.s32 %s358, %s356
      %s360 = smul.addr %s359, 8
      %s361 = scalar_lea.vmem %s2, %s360
      %s362 = sadd.s32 %s23, %s24
      %p363 = scmp.lt.s32.totalorder %s22, 1
      %s364 = scalar_select %p363, %s22, 1
      %p365 = scmp.lt.s32.totalorder %s23, 0
      %s366 = scalar_select %p365, %s23, 0
      %s367 = smul.addr %s366, 3
      %s368 = smul.addr %s364, 3
      %s369 = sadd.s32 %s367, %s368
      %s370 = smul.addr %s369, 8
      %s371 = scalar_lea.vmem %s3, %s370
      %p372 = scmp.lt.s32.totalorder %s22, 1
      %s373 = scalar_select %p372, %s22, 1
      %p374 = scmp.lt.s32.totalorder %s23, 0
      %s375 = scalar_select %p374, %s23, 0
      %s376 = smul.addr %s375, 3
      %s377 = smul.addr %s373, 3
      %s378 = sadd.s32 %s376, %s377
      %s379 = smul.addr %s378, 8
      %s380 = scalar_lea.vmem %s4, %s379
      %p381 = scmp.lt.s32.totalorder %s22, 1
      %s382 = scalar_select %p381, %s22, 1
      %p383 = scmp.lt.s32.totalorder %s23, 0
      %s384 = scalar_select %p383, %s23, 0
      %s385 = smul.addr %s384, 3
      %s386 = smul.addr %s382, 3
      %s387 = sadd.s32 %s385, %s386
      %s388 = smul.addr %s387, 8
      %s389 = scalar_lea.vmem %s5, %s388
      %p390 = scmp.eq.s32.totalorder %s24, 0
      // Predicated region
      $region33: #{forward.1} parent=31 // pred_check
        %p391 = pneg %p390
      $region34: #{forward.1} parent=31 // pred_check_branch
        %393 = sbr.rel (%p391) target = $region36
      $region35: #{forward.1} parent=31 // pred_region
        %vm394 = vcmask 7168
        %395 = vst.msk [vmem:[%s371] sm:$0xff] %vm394, 0.0
        %396 = vst.msk [vmem:[%s371 + $0x8] sm:$0xff] %vm394, 0.0
        %397 = vst.msk [vmem:[%s371 + $0x10] sm:$0xff] %vm394, 0.0
        %398 = vst.msk [vmem:[%s380] sm:$0xff] %vm394, 0.0
        %399 = vst.msk [vmem:[%s380 + $0x8] sm:$0xff] %vm394, 0.0
        %400 = vst.msk [vmem:[%s380 + $0x10] sm:$0xff] %vm394, 0.0
        %401 = vst.msk [vmem:[%s389] sm:$0xff] %vm394, 0.0
        %402 = vst.msk [vmem:[%s389 + $0x8] sm:$0xff] %vm394, 0.0
        %403 = vst.msk [vmem:[%s389 + $0x10] sm:$0xff] %vm394, 0.0
      $region36: #{forward.1} parent=31 // pred_fallthru
        _
      %v404 = vld [vmem:[%s361] sm:$0xff]
      %v405 = vld [vmem:[%s342] sm:$0xff]
      %v406 = vxor.u32 %v405, 2147483648
      %v407 = vmul.f32 %v406, 1.442695
      %v408 = vpow.pop %v407
      %v409 = vadd.f32 %v408, 1.0
      %v410 = vrcp.pop %v409
      %v411 = vmul.f32 1.0, %v410
      %v412 = vld [vmem:[%s352] sm:$0xff]
      %v413 = vmul.f32 %v404, %v411
      %v414 = vmul.f32 %v404, %v412
      %v415 = vld [vmem:[%s371] sm:$0xff]
      %v416 = vmul.f32 %v413, %v412
      %vm417 = vcmask 261120
      %v418 = vsel %vm417, %v416, 0.0
      %419 = vadd.xlane.f32.xlu0 %v418
      %v420 = vpop.xlane.xlu0 %419
      %v421 = vadd.f32 %v415, %v420
      %vm422 = vcmask 7168
      %423 = vst.msk [vmem:[%s371] sm:$0xff] %vm422, %v421
      %v424 = vld [vmem:[%s380] sm:$0xff]
      %v425 = vsel %vm417, %v413, 0.0
      %426 = vadd.xlane.f32.xlu0 %v425
      %v427 = vpop.xlane.xlu0 %426
      %v428 = vadd.f32 %v424, %v427
      %429 = vst.msk [vmem:[%s380] sm:$0xff] %vm422, %v428
      %v430 = vld [vmem:[%s389] sm:$0xff]
      %v431 = vsel %vm417, %v414, 0.0
      %432 = vadd.xlane.f32.xlu0 %v431
      %v433 = vpop.xlane.xlu0 %432
      %v434 = vadd.f32 %v430, %v433
      %435 = vst.msk [vmem:[%s389] sm:$0xff] %vm422, %v434
      %v436 = vld [vmem:[%s342 + $0x8] sm:$0xff]
      %v437 = vxor.u32 %v436, 2147483648
      %v438 = vmul.f32 %v437, 1.442695
      %v439 = vpow.pop %v438
      %v440 = vadd.f32 %v439, 1.0
      %v441 = vrcp.pop %v440
      %v442 = vmul.f32 1.0, %v441
      %v443 = vld [vmem:[%s352 + $0x8] sm:$0xff]
      %v444 = vmul.f32 %v404, %v442
      %v445 = vmul.f32 %v404, %v443
      %v446 = vld [vmem:[%s371 + $0x8] sm:$0xff]
      %v447 = vmul.f32 %v444, %v443
      %v448 = vsel %vm417, %v447, 0.0
      %449 = vadd.xlane.f32.xlu0 %v448
      %v450 = vpop.xlane.xlu0 %449
      %v451 = vadd.f32 %v446, %v450
      %452 = vst.msk [vmem:[%s371 + $0x8] sm:$0xff] %vm422, %v451
      %v453 = vld [vmem:[%s380 + $0x8] sm:$0xff]
      %v454 = vsel %vm417, %v444, 0.0
      %455 = vadd.xlane.f32.xlu0 %v454
      %v456 = vpop.xlane.xlu0 %455
      %v457 = vadd.f32 %v453, %v456
      %458 = vst.msk [vmem:[%s380 + $0x8] sm:$0xff] %vm422, %v457
      %v459 = vld [vmem:[%s389 + $0x8] sm:$0xff]
      %v460 = vsel %vm417, %v445, 0.0
      %461 = vadd.xlane.f32.xlu0 %v460
      %v462 = vpop.xlane.xlu0 %461
      %v463 = vadd.f32 %v459, %v462
      %464 = vst.msk [vmem:[%s389 + $0x8] sm:$0xff] %vm422, %v463
      %v465 = vld [vmem:[%s342 + $0x10] sm:$0xff]
      %v466 = vxor.u32 %v465, 2147483648
      %v467 = vmul.f32 %v466, 1.442695
      %v468 = vpow.pop %v467
      %v469 = vadd.f32 %v468, 1.0
      %v470 = vrcp.pop %v469
      %v471 = vmul.f32 1.0, %v470
      %v472 = vld [vmem:[%s352 + $0x10] sm:$0xff]
      %v473 = vmul.f32 %v404, %v471
      %v474 = vmul.f32 %v404, %v472
      %v475 = vld [vmem:[%s371 + $0x10] sm:$0xff]
      %v476 = vmul.f32 %v473, %v472
      %v477 = vsel %vm417, %v476, 0.0
      %478 = vadd.xlane.f32.xlu0 %v477
      %v479 = vpop.xlane.xlu0 %478
      %v480 = vadd.f32 %v475, %v479
      %481 = vst.msk [vmem:[%s371 + $0x10] sm:$0xff] %vm422, %v480
      %v482 = vld [vmem:[%s380 + $0x10] sm:$0xff]
      %v483 = vsel %vm417, %v473, 0.0
      %484 = vadd.xlane.f32.xlu0 %v483
      %v485 = vpop.xlane.xlu0 %484
      %v486 = vadd.f32 %v482, %v485
      %487 = vst.msk [vmem:[%s380 + $0x10] sm:$0xff] %vm422, %v486
      %v488 = vld [vmem:[%s389 + $0x10] sm:$0xff]
      %v489 = vsel %vm417, %v474, 0.0
      %490 = vadd.xlane.f32.xlu0 %v489
      %v491 = vpop.xlane.xlu0 %490
      %v492 = vadd.f32 %v488, %v491
      %493 = vst.msk [vmem:[%s389 + $0x10] sm:$0xff] %vm422, %v492
      %p494 = scmp.lt.s32.totalorder %s22, 1
      %s495 = scalar_select %p494, %s22, 1
      %p496 = scmp.lt.s32.totalorder %s23, 0
      %s497 = scalar_select %p496, %s23, 0
      %s498 = smul.addr %s497, 3
      %s499 = smul.addr %s495, 3
      %s500 = sadd.s32 %s498, %s499
      %s501 = smul.addr %s500, 8
      %s502 = scalar_lea.vmem %s3, %s501
      %p503 = scmp.lt.s32.totalorder %s22, 1
      %s504 = scalar_select %p503, %s22, 1
      %p505 = scmp.lt.s32.totalorder %s23, 0
      %s506 = scalar_select %p505, %s23, 0
      %s507 = smul.addr %s506, 3
      %s508 = smul.addr %s504, 3
      %s509 = sadd.s32 %s507, %s508
      %s510 = smul.addr %s509, 8
      %s511 = scalar_lea.vmem %s4, %s510
      %p512 = scmp.lt.s32.totalorder %s22, 1
      %s513 = scalar_select %p512, %s22, 1
      %p514 = scmp.lt.s32.totalorder %s23, 0
      %s515 = scalar_select %p514, %s23, 0
      %s516 = smul.addr %s515, 3
      %s517 = smul.addr %s513, 3
      %s518 = sadd.s32 %s516, %s517
      %s519 = smul.addr %s518, 8
      %s520 = scalar_lea.vmem %s5, %s519
      // Predicated region
      $region37: #{forward.1} parent=31 // pred_check
        %p521 = pneg %p146
      $region38: #{forward.1} parent=31 // pred_check_branch
        %523 = sbr.rel (%p521) target = $region40
      $region39: #{forward.1} parent=31 // pred_region
        _
      $region40: #{forward.1} parent=31 // pred_fallthru
        _
      // Predicated region
      $region41: #{forward.1} parent=31 // pred_check
        %p524 = pneg %p174
      $region42: #{forward.1} parent=31 // pred_check_branch
        %526 = sbr.rel (%p524) target = $region44
      $region43: #{forward.1} parent=31 // pred_region
        _
      $region44: #{forward.1} parent=31 // pred_fallthru
        _
      // Predicated region
      $region45: #{forward.1} parent=31 // pred_check
        %p527 = pneg %p202
      $region46: #{forward.1} parent=31 // pred_check_branch
        %529 = sbr.rel (%p527) target = $region48
      $region47: #{forward.1} parent=31 // pred_region
        _
      $region48: #{forward.1} parent=31 // pred_fallthru
        _
    $region32: #{forward.1} parent=5 // pred_fallthru
      _
    %p530 = scmp.le.s32.totalorder 2, %s12
    // Predicated region
    $region49: #{forward.1} parent=5 // pred_check
      %p531 = pneg %p530
    $region50: #{forward.1} parent=5 // pred_check_branch
      %533 = sbr.rel (%p531) target = $region52
    $region51: #{forward.1} parent=5 // pred_region
      %s534 = ssub.s32 %s12, 2
      // Predicated region
      $region53: #{forward.1} parent=51 // pred_check
        %p535 = pneg %p152
      $region54: #{forward.1} parent=51 // pred_check_branch
        %537 = sbr.rel (%p535) target = $region56
      $region55: #{forward.1} parent=51 // pred_region
        %p538 = scmp.lt.s32.totalorder %s25, 1
        %s539 = scalar_select %p538, %s25, 1
        %p540 = scmp.lt.s32.totalorder %s26, 0
        %s541 = scalar_select %p540, %s26, 0
        %s542 = smul.addr %s541, 3
        %s543 = smul.addr %s539, 3
        %s544 = sadd.s32 %s542, %s543
        %s545 = smul.addr %s544, 8
        %s546 = scalar_lea.vmem %s3, %s545
      $region56: #{forward.1} parent=51 // pred_fallthru
        _
      // Predicated region
      $region57: #{forward.1} parent=51 // pred_check
        %p547 = pneg %p180
      $region58: #{forward.1} parent=51 // pred_check_branch
        %549 = sbr.rel (%p547) target = $region60
      $region59: #{forward.1} parent=51 // pred_region
        %p550 = scmp.lt.s32.totalorder %s25, 1
        %s551 = scalar_select %p550, %s25, 1
        %p552 = scmp.lt.s32.totalorder %s26, 0
        %s553 = scalar_select %p552, %s26, 0
        %s554 = smul.addr %s553, 3
        %s555 = smul.addr %s551, 3
        %s556 = sadd.s32 %s554, %s555
        %s557 = smul.addr %s556, 8
        %s558 = scalar_lea.vmem %s4, %s557
      $region60: #{forward.1} parent=51 // pred_fallthru
        _
      // Predicated region
      $region61: #{forward.1} parent=51 // pred_check
        %p559 = pneg %p208
      $region62: #{forward.1} parent=51 // pred_check_branch
        %561 = sbr.rel (%p559) target = $region64
      $region63: #{forward.1} parent=51 // pred_region
        %p562 = scmp.lt.s32.totalorder %s25, 1
        %s563 = scalar_select %p562, %s25, 1
        %p564 = scmp.lt.s32.totalorder %s26, 0
        %s565 = scalar_select %p564, %s26, 0
        %s566 = smul.addr %s565, 3
        %s567 = smul.addr %s563, 3
        %s568 = sadd.s32 %s566, %s567
        %s569 = smul.addr %s568, 8
        %s570 = scalar_lea.vmem %s5, %s569
      $region64: #{forward.1} parent=51 // pred_fallthru
        _
    $region52: #{forward.1} parent=5 // pred_fallthru
      _
  $region6: #{forward.1} parent=0 // loop_footer
    %s16 = sadd.s32 1, %s12
  $region7: #{forward.1} parent=0 // loop_footer_branch
    %11 = sbr.rel target = $region3
  $region8: #{forward.1} parent=0 // loop_exit
    _

</llo_original>
